<compile_context>
chip_gen: v7x
topology: tpu7x:2x2x1
jax: 0.10.0
libtpu: 0.0.40
codegen_flags: <defaults>
</compile_context>

<pallas_src>
import jax
import jax.numpy as jnp
from jax.experimental import pallas as pl
from jax.experimental.pallas import tpu as pltpu

LN_EPS = 1e-5
LANE = 128
SUBLANE = 8


def _cdiv(a, b):
    return -(-a // b)


def _round_up(x, m):
    return _cdiv(x, m) * m


# ----------------------------------------------------------------------------- kernel


def _ln_relu(h, gamma, beta):
    """Fused LayerNorm (two-pass variance, eps inside rsqrt, affine) + ReLU."""
    inv_n = 1.0 / h.shape[-1]
    mean = jnp.sum(h, axis=-1, keepdims=True) * inv_n
    c = h - mean
    var = jnp.sum(c * c, axis=-1, keepdims=True) * inv_n
    return jnp.maximum(c * (jax.lax.rsqrt(var + LN_EPS) * gamma) + beta, 0.0)


def actor_kernel(x_ref,
                 w1_ref, b1_ref, g1_ref, be1_ref,
                 w2_ref, b2_ref, g2_ref, be2_ref,
                 wmu_ref, bmu_ref,
                 out_ref):
    # linear1 + ln1 + relu.  MXU operands are used at their stored dtype (f32 or
    # pre-cast bf16); accumulation / LN / tanh are f32.
    h = jnp.dot(x_ref[...], w1_ref[...],
                preferred_element_type=jnp.float32) + b1_ref[...]
    h = _ln_relu(h, g1_ref[...], be1_ref[...])

    # linear2 + ln2 + relu
    h = jnp.dot(h.astype(w2_ref.dtype), w2_ref[...],
                preferred_element_type=jnp.float32) + b2_ref[...]
    h = _ln_relu(h, g2_ref[...], be2_ref[...])

    # mu head + tanh (padded mu columns, if any, are tanh(0) = 0)
    mu = jnp.dot(h.astype(wmu_ref.dtype), wmu_ref[...],
                 preferred_element_type=jnp.float32) + bmu_ref[...]
    out_ref[...] = jnp.tanh(mu)


# ----------------------------------------------------------------------------- wrapper


def prepare_actor_params(params, *, use_bf16=False, lane_dense_output=True):
    """One-time parameter prep (hoisted out of the per-call hot path):
    pad w_mu/b_mu to a lane-dense multiple of 128 and pre-cast MXU operands."""
    num_outputs = params["w_mu"].shape[1]
    out_pad = _round_up(num_outputs, LANE) if lane_dense_output else num_outputs
    w_mu, b_mu = params["w_mu"], params["b_mu"]
    if out_pad != num_outputs:
        w_mu = jnp.pad(w_mu, ((0, 0), (0, out_pad - num_outputs)))
        b_mu = jnp.pad(b_mu, ((0, 0), (0, out_pad - num_outputs)))
    mat_dtype = jnp.bfloat16 if use_bf16 else jnp.float32
    return {
        "w1": params["w1"].astype(mat_dtype),
        "w2": params["w2"].astype(mat_dtype),
        "w_mu": w_mu.astype(mat_dtype),
        "b1": params["b1"], "g1": params["g1"], "beta1": params["beta1"],
        "b2": params["b2"], "g2": params["g2"], "beta2": params["beta2"],
        "b_mu": b_mu,
        "num_outputs": num_outputs,
    }


def _resident_spec(arr):
    # Weights / biases / LN params: constant index_map -> DMA'd once, VMEM-resident.
    # Buffered(1): a never-changing block needs no double buffer (halves residency).
    idx = lambda i: (0,) * arr.ndim
    try:
        return pl.BlockSpec(arr.shape, idx, pipeline_mode=pl.Buffered(1))
    except (TypeError, ValueError):
        return pl.BlockSpec(arr.shape, idx)


def actor_forward(x, prep, *, block_batch=512, return_padded=False):
    """x: (B, num_inputs) f32; prep: output of prepare_actor_params (call once)."""
    B, num_inputs = x.shape
    H = prep["w1"].shape[1]
    num_outputs = prep["num_outputs"]
    out_pad = prep["w_mu"].shape[1]
    mat_dtype = prep["w1"].dtype

    # Pre-cast the activation MXU operand in the wrapper (halves x DMA on bf16 path).
    x_in = x if x.dtype == mat_dtype else x.astype(mat_dtype)

    # --- batch tiling --------------------------------------------------------
    # >= 2 grid steps whenever the batch allows it (v7x megacore sharding), and a
    # tile chosen so batch padding never exceeds one sublane group per step.
    sub = SUBLANE if mat_dtype == jnp.float32 else 2 * SUBLANE   # bf16 packs 16 rows
    n_steps = max(_cdiv(B, block_batch), 2 if B >= 2 * sub else 1)
    tb = _round_up(_cdiv(B, n_steps), sub)
    b_pad = n_steps * tb
    if b_pad != B:
        x_in = jnp.pad(x_in, ((0, b_pad - B), (0, 0)))
    grid = (n_steps,)

    residents = (prep["w1"], prep["b1"], prep["g1"], prep["beta1"],
                 prep["w2"], prep["b2"], prep["g2"], prep["beta2"],
                 prep["w_mu"], prep["b_mu"])

    # --- VMEM budget (resident params single-buffered + double-buffered tiles) ---
    resident_bytes = sum(int(a.size) * a.dtype.itemsize for a in residents)
    tile_bytes = 2 * tb * num_inputs * x_in.dtype.itemsize + 2 * tb * out_pad * 4
    vmem_limit = min(max(int(1.25 * (resident_bytes + tile_bytes)) + (2 << 20),
                         16 << 20), 128 << 20)

    cost = pl.CostEstimate(
        flops=2 * b_pad * (num_inputs * H + H * H + H * out_pad),
        transcendentals=b_pad * (out_pad + 2),     # tanh lanes + 2 rsqrt per row
        bytes_accessed=(x_in.size * x_in.dtype.itemsize
                        + 4 * b_pad * out_pad + resident_bytes),
    )

    out = pl.pallas_call(
        actor_kernel,
        out_shape=jax.ShapeDtypeStruct((b_pad, out_pad), jnp.float32),
        grid=grid,
        in_specs=[pl.BlockSpec((tb, num_inputs), lambda i: (i, 0))]
                 + [_resident_spec(a) for a in residents],
        out_specs=pl.BlockSpec((tb, out_pad), lambda i: (i, 0)),
        compiler_params=pltpu.CompilerParams(
            dimension_semantics=("parallel",),
            vmem_limit_bytes=vmem_limit),
        cost_estimate=cost,
    )(x_in, *residents)

    if return_padded:
        return out                       # (b_pad, out_pad); consumer slices lazily
    return out[:B, :num_outputs]


# ----------------------------------------------------------------------------- init / reference


def init_actor_params(key, num_inputs, hidden_size, num_outputs):
    """Deterministic synthetic init (PyTorch-Linear-like uniform fan-in bounds)."""
    keys = jax.random.split(key, 6)

    def linear(kw, kb, fan_in, fan_out):
        bound = 1.0 / jnp.sqrt(jnp.asarray(fan_in, jnp.float32))
        # stored as (in_features, out_features) so the kernel does x @ W
        w = jax.random.uniform(kw, (fan_in, fan_out), jnp.float32, -bound, bound)
        b = jax.random.uniform(kb, (1, fan_out), jnp.float32, -bound, bound)
        return w, b

    w1, b1 = linear(keys[0], keys[1], num_inputs, hidden_size)
    w2, b2 = linear(keys[2], keys[3], hidden_size, hidden_size)
    w_mu, b_mu = linear(keys[4], keys[5], hidden_size, num_outputs)
    # self.mu.weight.data.mul_(0.1); self.mu.bias.data.mul_(0.1)
    w_mu = w_mu * 0.1
    b_mu = b_mu * 0.1

    return {
        "w1": w1, "b1": b1,
        "g1": jnp.ones((1, hidden_size), jnp.float32),
        "beta1": jnp.zeros((1, hidden_size), jnp.float32),
        "w2": w2, "b2": b2,
        "g2": jnp.ones((1, hidden_size), jnp.float32),
        "beta2": jnp.zeros((1, hidden_size), jnp.float32),
        "w_mu": w_mu, "b_mu": b_mu,
    }


def _layernorm_ref(h, gamma, beta):
    mean = jnp.mean(h, axis=-1, keepdims=True)
    var = jnp.mean((h - mean) ** 2, axis=-1, keepdims=True)
    return (h - mean) * jax.lax.rsqrt(var + LN_EPS) * gamma + beta


def actor_forward_ref(x, p):
    """Pure-JAX reference (matches the PyTorch module, f32)."""
    h = x @ p["w1"] + p["b1"]
    h = jnp.maximum(_layernorm_ref(h, p["g1"], p["beta1"]), 0.0)
    h = h @ p["w2"] + p["b2"]
    h = jnp.maximum(_layernorm_ref(h, p["g2"], p["beta2"]), 0.0)
    return jnp.tanh(h @ p["w_mu"] + p["b_mu"])


if __name__ == "__main__":
    batch = 2
    num_inputs = 16
    hidden_size = 32
    num_outputs = 8   # action_space.shape[0]

    key = jax.random.PRNGKey(0)
    k_x, k_p, k_x2 = jax.random.split(key, 3)
    params = init_actor_params(k_p, num_inputs, hidden_size, num_outputs)

    # one-time parameter prep (hoisted out of the hot path)
    prep = prepare_actor_params(params)
    prep_bf16 = prepare_actor_params(params, use_bf16=True)

    # small batch (spec shapes)
    x = jax.random.normal(k_x, (batch, num_inputs), jnp.float32)
    mu = jax.block_until_ready(actor_forward(x, prep))
    ref = actor_forward_ref(x, params)
    assert mu.shape == (batch, num_outputs)
    assert jnp.allclose(mu, ref, atol=3e-5, rtol=3e-5), "mismatch vs reference (B=2)"

    # larger, non-tile-aligned batch exercises the 2-step grid + minimal batch padding
    xb = jax.random.normal(k_x2, (300, num_inputs), jnp.float32)
    mub = jax.block_until_ready(actor_forward(xb, prep))
    refb = actor_forward_ref(xb, params)
    assert mub.shape == (300, num_outputs)
    assert jnp.allclose(mub, refb, atol=3e-5, rtol=3e-5), "mismatch vs reference (B=300)"

    # bf16 MXU-operand path (pre-cast weights/x, f32 accumulation + f32 LN/tanh)
    mub16 = jax.block_until_ready(actor_forward(xb, prep_bf16))
    assert jnp.allclose(mub16, refb, atol=2e-2, rtol=2e-2), "bf16 path diverged"

    print("KERNEL_OK")
</pallas_src>

<mosaic_0001>
module attributes {stable_mosaic.version = 11 : i64} {
  func.func @actor_kernel(%arg0: i32, %arg1: memref<8x16xf32, #tpu.memory_space<vmem>>, %arg2: memref<16x32xf32, #tpu.memory_space<vmem>>, %arg3: memref<1x32xf32, #tpu.memory_space<vmem>>, %arg4: memref<1x32xf32, #tpu.memory_space<vmem>>, %arg5: memref<1x32xf32, #tpu.memory_space<vmem>>, %arg6: memref<32x32xf32, #tpu.memory_space<vmem>>, %arg7: memref<1x32xf32, #tpu.memory_space<vmem>>, %arg8: memref<1x32xf32, #tpu.memory_space<vmem>>, %arg9: memref<1x32xf32, #tpu.memory_space<vmem>>, %arg10: memref<32x128xf32, #tpu.memory_space<vmem>>, %arg11: memref<1x128xf32, #tpu.memory_space<vmem>>, %arg12: memref<8x128xf32, #tpu.memory_space<vmem>>) attributes {dimension_semantics = [#tpu.dimension_semantics<parallel>], iteration_bounds = array<i64: 1>, scalar_prefetch = 0 : i64, scratch_operands = 0 : i64, tpu.core_type = #tpu.core_type<tc>, window_params = [{transform_indices = @transform_0, window_bounds = array<i64: 8, 16>}, {pipeline_mode = #tpu.pipeline_mode<synchronous>, transform_indices = @transform_1, window_bounds = array<i64: 16, 32>}, {pipeline_mode = #tpu.pipeline_mode<synchronous>, transform_indices = @transform_2, window_bounds = array<i64: 1, 32>}, {pipeline_mode = #tpu.pipeline_mode<synchronous>, transform_indices = @transform_3, window_bounds = array<i64: 1, 32>}, {pipeline_mode = #tpu.pipeline_mode<synchronous>, transform_indices = @transform_4, window_bounds = array<i64: 1, 32>}, {pipeline_mode = #tpu.pipeline_mode<synchronous>, transform_indices = @transform_5, window_bounds = array<i64: 32, 32>}, {pipeline_mode = #tpu.pipeline_mode<synchronous>, transform_indices = @transform_6, window_bounds = array<i64: 1, 32>}, {pipeline_mode = #tpu.pipeline_mode<synchronous>, transform_indices = @transform_7, window_bounds = array<i64: 1, 32>}, {pipeline_mode = #tpu.pipeline_mode<synchronous>, transform_indices = @transform_8, window_bounds = array<i64: 1, 32>}, {pipeline_mode = #tpu.pipeline_mode<synchronous>, transform_indices = @transform_9, window_bounds = array<i64: 32, 128>}, {pipeline_mode = #tpu.pipeline_mode<synchronous>, transform_indices = @transform_10, window_bounds = array<i64: 1, 128>}, {transform_indices = @transform_11, window_bounds = array<i64: 8, 128>}]} {
    %c0 = arith.constant 0 : index
    %c0_0 = arith.constant 0 : index
    %0 = vector.load %arg1[%c0, %c0_0] : memref<8x16xf32, #tpu.memory_space<vmem>>, vector<8x16xf32>
    %c0_1 = arith.constant 0 : index
    %c0_2 = arith.constant 0 : index
    %1 = vector.load %arg2[%c0_1, %c0_2] : memref<16x32xf32, #tpu.memory_space<vmem>>, vector<16x32xf32>
    %cst = arith.constant dense<0.000000e+00> : vector<8x32xf32>
    %2 = tpu.matmul %0, %1, %cst {dimension_numbers = #tpu.dot_dimension_numbers<[1], [0], [0], [1], [0, 0, 1, 1], [], []>} : vector<8x16xf32>, vector<16x32xf32>, vector<8x32xf32> -> vector<8x32xf32>
    %c0_3 = arith.constant 0 : index
    %c0_4 = arith.constant 0 : index
    %3 = vector.load %arg3[%c0_3, %c0_4] : memref<1x32xf32, #tpu.memory_space<vmem>>, vector<1x32xf32>
    %4 = vector.broadcast %3 : vector<1x32xf32> to vector<8x32xf32>
    %5 = arith.addf %2, %4 : vector<8x32xf32>
    %c0_5 = arith.constant 0 : index
    %c0_6 = arith.constant 0 : index
    %6 = vector.load %arg4[%c0_5, %c0_6] : memref<1x32xf32, #tpu.memory_space<vmem>>, vector<1x32xf32>
    %c0_7 = arith.constant 0 : index
    %c0_8 = arith.constant 0 : index
    %7 = vector.load %arg5[%c0_7, %c0_8] : memref<1x32xf32, #tpu.memory_space<vmem>>, vector<1x32xf32>
    %cst_9 = arith.constant dense<0.000000e+00> : vector<8xf32>
    %8 = vector.multi_reduction <add>, %5, %cst_9 [1] : vector<8x32xf32> to vector<8xf32>
    %9 = vector.shape_cast %8 : vector<8xf32> to vector<8x1xf32>
    %cst_10 = arith.constant 3.125000e-02 : f32
    %10 = vector.broadcast %cst_10 : f32 to vector<8x1xf32>
    %11 = arith.mulf %9, %10 : vector<8x1xf32>
    %12 = vector.broadcast %11 : vector<8x1xf32> to vector<8x32xf32>
    %13 = arith.subf %5, %12 : vector<8x32xf32>
    %14 = arith.mulf %13, %13 : vector<8x32xf32>
    %cst_11 = arith.constant dense<0.000000e+00> : vector<8xf32>
    %15 = vector.multi_reduction <add>, %14, %cst_11 [1] : vector<8x32xf32> to vector<8xf32>
    %16 = vector.shape_cast %15 : vector<8xf32> to vector<8x1xf32>
    %cst_12 = arith.constant 3.125000e-02 : f32
    %17 = vector.broadcast %cst_12 : f32 to vector<8x1xf32>
    %18 = arith.mulf %16, %17 : vector<8x1xf32>
    %cst_13 = arith.constant 9.99999974E-6 : f32
    %19 = vector.broadcast %cst_13 : f32 to vector<8x1xf32>
    %20 = arith.addf %18, %19 : vector<8x1xf32>
    %21 = math.rsqrt %20 : vector<8x1xf32>
    %22 = vector.broadcast %21 : vector<8x1xf32> to vector<8x32xf32>
    %23 = vector.broadcast %6 : vector<1x32xf32> to vector<8x32xf32>
    %24 = arith.mulf %22, %23 : vector<8x32xf32>
    %25 = arith.mulf %13, %24 : vector<8x32xf32>
    %26 = vector.broadcast %7 : vector<1x32xf32> to vector<8x32xf32>
    %27 = arith.addf %25, %26 : vector<8x32xf32>
    %cst_14 = arith.constant 0.000000e+00 : f32
    %28 = vector.broadcast %cst_14 : f32 to vector<8x32xf32>
    %29 = arith.maximumf %27, %28 : vector<8x32xf32>
    %c0_15 = arith.constant 0 : index
    %c0_16 = arith.constant 0 : index
    %30 = vector.load %arg6[%c0_15, %c0_16] : memref<32x32xf32, #tpu.memory_space<vmem>>, vector<32x32xf32>
    %cst_17 = arith.constant dense<0.000000e+00> : vector<8x32xf32>
    %31 = tpu.matmul %29, %30, %cst_17 {dimension_numbers = #tpu.dot_dimension_numbers<[1], [0], [0], [1], [0, 0, 1, 1], [], []>} : vector<8x32xf32>, vector<32x32xf32>, vector<8x32xf32> -> vector<8x32xf32>
    %c0_18 = arith.constant 0 : index
    %c0_19 = arith.constant 0 : index
    %32 = vector.load %arg7[%c0_18, %c0_19] : memref<1x32xf32, #tpu.memory_space<vmem>>, vector<1x32xf32>
    %33 = vector.broadcast %32 : vector<1x32xf32> to vector<8x32xf32>
    %34 = arith.addf %31, %33 : vector<8x32xf32>
    %c0_20 = arith.constant 0 : index
    %c0_21 = arith.constant 0 : index
    %35 = vector.load %arg8[%c0_20, %c0_21] : memref<1x32xf32, #tpu.memory_space<vmem>>, vector<1x32xf32>
    %c0_22 = arith.constant 0 : index
    %c0_23 = arith.constant 0 : index
    %36 = vector.load %arg9[%c0_22, %c0_23] : memref<1x32xf32, #tpu.memory_space<vmem>>, vector<1x32xf32>
    %cst_24 = arith.constant dense<0.000000e+00> : vector<8xf32>
    %37 = vector.multi_reduction <add>, %34, %cst_24 [1] : vector<8x32xf32> to vector<8xf32>
    %38 = vector.shape_cast %37 : vector<8xf32> to vector<8x1xf32>
    %cst_25 = arith.constant 3.125000e-02 : f32
    %39 = vector.broadcast %cst_25 : f32 to vector<8x1xf32>
    %40 = arith.mulf %38, %39 : vector<8x1xf32>
    %41 = vector.broadcast %40 : vector<8x1xf32> to vector<8x32xf32>
    %42 = arith.subf %34, %41 : vector<8x32xf32>
    %43 = arith.mulf %42, %42 : vector<8x32xf32>
    %cst_26 = arith.constant dense<0.000000e+00> : vector<8xf32>
    %44 = vector.multi_reduction <add>, %43, %cst_26 [1] : vector<8x32xf32> to vector<8xf32>
    %45 = vector.shape_cast %44 : vector<8xf32> to vector<8x1xf32>
    %cst_27 = arith.constant 3.125000e-02 : f32
    %46 = vector.broadcast %cst_27 : f32 to vector<8x1xf32>
    %47 = arith.mulf %45, %46 : vector<8x1xf32>
    %cst_28 = arith.constant 9.99999974E-6 : f32
    %48 = vector.broadcast %cst_28 : f32 to vector<8x1xf32>
    %49 = arith.addf %47, %48 : vector<8x1xf32>
    %50 = math.rsqrt %49 : vector<8x1xf32>
    %51 = vector.broadcast %50 : vector<8x1xf32> to vector<8x32xf32>
    %52 = vector.broadcast %35 : vector<1x32xf32> to vector<8x32xf32>
    %53 = arith.mulf %51, %52 : vector<8x32xf32>
    %54 = arith.mulf %42, %53 : vector<8x32xf32>
    %55 = vector.broadcast %36 : vector<1x32xf32> to vector<8x32xf32>
    %56 = arith.addf %54, %55 : vector<8x32xf32>
    %cst_29 = arith.constant 0.000000e+00 : f32
    %57 = vector.broadcast %cst_29 : f32 to vector<8x32xf32>
    %58 = arith.maximumf %56, %57 : vector<8x32xf32>
    %c0_30 = arith.constant 0 : index
    %c0_31 = arith.constant 0 : index
    %59 = vector.load %arg10[%c0_30, %c0_31] : memref<32x128xf32, #tpu.memory_space<vmem>>, vector<32x128xf32>
    %cst_32 = arith.constant dense<0.000000e+00> : vector<8x128xf32>
    %60 = tpu.matmul %58, %59, %cst_32 {dimension_numbers = #tpu.dot_dimension_numbers<[1], [0], [0], [1], [0, 0, 1, 1], [], []>} : vector<8x32xf32>, vector<32x128xf32>, vector<8x128xf32> -> vector<8x128xf32>
    %c0_33 = arith.constant 0 : index
    %c0_34 = arith.constant 0 : index
    %61 = vector.load %arg11[%c0_33, %c0_34] : memref<1x128xf32, #tpu.memory_space<vmem>>, vector<1x128xf32>
    %62 = vector.broadcast %61 : vector<1x128xf32> to vector<8x128xf32>
    %63 = arith.addf %60, %62 : vector<8x128xf32>
    %64 = math.tanh %63 : vector<8x128xf32>
    %c0_35 = arith.constant 0 : index
    %c0_36 = arith.constant 0 : index
    %65 = vector.load %arg12[%c0_35, %c0_36] : memref<8x128xf32, #tpu.memory_space<vmem>>, vector<8x128xf32>
    tpu.vector_store %arg12[%c0_35, %c0_36], %64 {strides = array<i32>} : memref<8x128xf32, #tpu.memory_space<vmem>>, vector<8x128xf32>,
    return
  }
  func.func @transform_0(%arg0: i32) -> (i32, i32) {
    %c0_i32 = arith.constant 0 : i32
    %c0_i32_0 = arith.constant 0 : i32
    return %arg0, %c0_i32 : i32, i32
  }
  func.func @transform_1(%arg0: i32) -> (i32, i32) {
    %c0_i32 = arith.constant 0 : i32
    %c0_i32_0 = arith.constant 0 : i32
    %c0_i32_1 = arith.constant 0 : i32
    return %c0_i32, %c0_i32_0 : i32, i32
  }
  func.func @transform_2(%arg0: i32) -> (i32, i32) {
    %c0_i32 = arith.constant 0 : i32
    %c0_i32_0 = arith.constant 0 : i32
    %c0_i32_1 = arith.constant 0 : i32
    return %c0_i32, %c0_i32_0 : i32, i32
  }
  func.func @transform_3(%arg0: i32) -> (i32, i32) {
    %c0_i32 = arith.constant 0 : i32
    %c0_i32_0 = arith.constant 0 : i32
    %c0_i32_1 = arith.constant 0 : i32
    return %c0_i32, %c0_i32_0 : i32, i32
  }
  func.func @transform_4(%arg0: i32) -> (i32, i32) {
    %c0_i32 = arith.constant 0 : i32
    %c0_i32_0 = arith.constant 0 : i32
    %c0_i32_1 = arith.constant 0 : i32
    return %c0_i32, %c0_i32_0 : i32, i32
  }
  func.func @transform_5(%arg0: i32) -> (i32, i32) {
    %c0_i32 = arith.constant 0 : i32
    %c0_i32_0 = arith.constant 0 : i32
    %c0_i32_1 = arith.constant 0 : i32
    return %c0_i32, %c0_i32_0 : i32, i32
  }
  func.func @transform_6(%arg0: i32) -> (i32, i32) {
    %c0_i32 = arith.constant 0 : i32
    %c0_i32_0 = arith.constant 0 : i32
    %c0_i32_1 = arith.constant 0 : i32
    return %c0_i32, %c0_i32_0 : i32, i32
  }
  func.func @transform_7(%arg0: i32) -> (i32, i32) {
    %c0_i32 = arith.constant 0 : i32
    %c0_i32_0 = arith.constant 0 : i32
    %c0_i32_1 = arith.constant 0 : i32
    return %c0_i32, %c0_i32_0 : i32, i32
  }
  func.func @transform_8(%arg0: i32) -> (i32, i32) {
    %c0_i32 = arith.constant 0 : i32
    %c0_i32_0 = arith.constant 0 : i32
    %c0_i32_1 = arith.constant 0 : i32
    return %c0_i32, %c0_i32_0 : i32, i32
  }
  func.func @transform_9(%arg0: i32) -> (i32, i32) {
    %c0_i32 = arith.constant 0 : i32
    %c0_i32_0 = arith.constant 0 : i32
    %c0_i32_1 = arith.constant 0 : i32
    return %c0_i32, %c0_i32_0 : i32, i32
  }
  func.func @transform_10(%arg0: i32) -> (i32, i32) {
    %c0_i32 = arith.constant 0 : i32
    %c0_i32_0 = arith.constant 0 : i32
    %c0_i32_1 = arith.constant 0 : i32
    return %c0_i32, %c0_i32_0 : i32, i32
  }
  func.func @transform_11(%arg0: i32) -> (i32, i32) {
    %c0_i32 = arith.constant 0 : i32
    %c0_i32_0 = arith.constant 0 : i32
    return %arg0, %c0_i32 : i32, i32
  }
}

</mosaic_0001>

<llo_original>
// kernel: tpu_custom_call.1
$region0: #{tpu_custom_call.1}
  #allocation0 [shape = 'u32[]', space=smem, size = 0x4, offset = 0x4, fixed_abs, tag = 'smem constant byte address 0x4 - core index']
  #allocation1 [shape = 'u32[144,128]{1,0:T(1,128)}', space=vmem, size = 0x12000, scoped, tag = 'internal scratch']
  %s0 = inlined_call_operand.hbm [shape: f32[8,16], index: 0, kind: input, shape index: {}]
  %s1 = inlined_call_operand.hbm [shape: f32[16,32], index: 1, kind: input, shape index: {}]
  %s2 = inlined_call_operand.vmem [shape: f32[1,32], index: 2, kind: input, shape index: {}]
  %s3 = inlined_call_operand.vmem [shape: f32[1,32], index: 3, kind: input, shape index: {}]
  %s4 = inlined_call_operand.hbm [shape: f32[1,32], index: 4, kind: input, shape index: {}]
  %s5 = inlined_call_operand.hbm [shape: f32[32,32], index: 5, kind: input, shape index: {}]
  %s6 = inlined_call_operand.hbm [shape: f32[1,32], index: 6, kind: input, shape index: {}]
  %s7 = inlined_call_operand.hbm [shape: f32[1,32], index: 7, kind: input, shape index: {}]
  %s8 = inlined_call_operand.hbm [shape: f32[1,32], index: 8, kind: input, shape index: {}]
  %s9 = inlined_call_operand.vmem [shape: f32[32,128], index: 9, kind: input, shape index: {}]
  %s10 = inlined_call_operand.vmem [shape: f32[1,128], index: 10, kind: input, shape index: {}]
  %s11 = inlined_call_operand.hbm [shape: f32[8,128], index: 11, kind: output, shape index: {}]
  %s12 = sld [smem:[#allocation0]]
  $region82: #{tpu_custom_call.1} parent=0
    _
  %s14 = ssub.s32 1, %s12
  %s15 = scalar_select 0, %s14, %s12
  $region1: #{tpu_custom_call.1} parent=0
    #allocation2 [shape = 'u8[4096]{0}', space=vmem, size = 0x1000, scoped, tag = 'input window, operand 0, single buffered']
    #allocation3 [shape = 's32[1]{0}', space=sflag, size = 0x4, scoped, tag = 'scoped memory for tpu_custom_call.1']
    #allocation4 [shape = 's32[1]{0}', space=sflag, size = 0x4, scoped, tag = 'scoped memory for tpu_custom_call.1']
    #allocation5 [shape = 'u8[8192]{0}', space=vmem, size = 0x2000, scoped, tag = 'input window, operand 1, single buffered']
    #allocation6 [shape = 's32[1]{0}', space=sflag, size = 0x4, scoped, tag = 'scoped memory for tpu_custom_call.1']
    #allocation7 [shape = 'u8[512]{0}', space=vmem, size = 0x400, scoped, tag = 'input window, operand 4, single buffered']
    #allocation8 [shape = 'u8[16384]{0}', space=vmem, size = 0x4000, scoped, tag = 'input window, operand 5, single buffered']
    #allocation9 [shape = 's32[1]{0}', space=sflag, size = 0x4, scoped, tag = 'scoped memory for tpu_custom_call.1']
    #allocation10 [shape = 'u8[512]{0}', space=vmem, size = 0x400, scoped, tag = 'input window, operand 6, single buffered']
    #allocation11 [shape = 'u8[512]{0}', space=vmem, size = 0x400, scoped, tag = 'input window, operand 7, single buffered']
    #allocation12 [shape = 's32[1]{0}', space=sflag, size = 0x4, scoped, tag = 'scoped memory for tpu_custom_call.1']
    #allocation13 [shape = 'u8[512]{0}', space=vmem, size = 0x400, scoped, tag = 'input window, operand 8, single buffered']
    #allocation14 [shape = 'u8[4096]{0}', space=vmem, size = 0x1000, scoped, tag = 'output window, operand 0, single buffered']
    %16 = vsyncpa [#allocation3], 0
    %17 = vsyncpa [#allocation6], 0
    %18 = vsyncpa [#allocation9], 0
    %19 = vsyncpa [#allocation12], 0
    %20 = vsyncpa [#allocation4], 0
    // Predicated region
    $region2: #{tpu_custom_call.1} parent=1 // pred_check
      _
    $region3: #{tpu_custom_call.1} parent=1 // pred_check_branch
      %22 = sbr.rel (0) target = $region5
    $region4: #{tpu_custom_call.1} parent=1 // pred_region
      %s24 = ssub.s32 128, 128
      %25 = vsyncadd [#allocation3], %s24
      %s27 = sshll.u32 [#allocation2], 4
      %s28 = int_to_ptr.vmem [resolvable:$true] %s27
      %30 = dma.hbm_to_vmem [thread:$0]  %s0, 128, %s28, [#allocation3]
    $region5: #{tpu_custom_call.1} parent=1 // pred_fallthru
      _
    // Predicated region
    $region6: #{tpu_custom_call.1} parent=1 // pred_check
      _
    $region7: #{tpu_custom_call.1} parent=1 // pred_check_branch
      %32 = sbr.rel (0) target = $region9
    $region8: #{tpu_custom_call.1} parent=1 // pred_region
      %s34 = ssub.s32 256, 256
      %35 = vsyncadd [#allocation6], %s34
      %s36 = sshll.u32 [#allocation5], 4
      %s37 = int_to_ptr.vmem [resolvable:$true] %s36
      %42 = dma.hbm_to_vmem [thread:$0]  %s1, 256, %s37, [#allocation6], 128, 128, 8
    $region9: #{tpu_custom_call.1} parent=1 // pred_fallthru
      _
    // Predicated region
    $region10: #{tpu_custom_call.1} parent=1 // pred_check
      _
    $region11: #{tpu_custom_call.1} parent=1 // pred_check_branch
      %44 = sbr.rel (0) target = $region13
    $region12: #{tpu_custom_call.1} parent=1 // pred_region
      _
    $region13: #{tpu_custom_call.1} parent=1 // pred_fallthru
      _
    // Predicated region
    $region14: #{tpu_custom_call.1} parent=1 // pred_check
      _
    $region15: #{tpu_custom_call.1} parent=1 // pred_check_branch
      %46 = sbr.rel (0) target = $region17
    $region16: #{tpu_custom_call.1} parent=1 // pred_region
      _
    $region17: #{tpu_custom_call.1} parent=1 // pred_fallthru
      _
    // Predicated region
    $region18: #{tpu_custom_call.1} parent=1 // pred_check
      _
    $region19: #{tpu_custom_call.1} parent=1 // pred_check_branch
      %48 = sbr.rel (0) target = $region21
    $region20: #{tpu_custom_call.1} parent=1 // pred_region
      %s50 = ssub.s32 16, 16
      %51 = vsyncadd [#allocation6], %s50
      %s53 = sshll.u32 [#allocation7], 4
      %s54 = int_to_ptr.vmem [resolvable:$true] %s53
      %56 = dma.hbm_to_vmem [thread:$0]  %s4, 16, %s54, [#allocation6]
    $region21: #{tpu_custom_call.1} parent=1 // pred_fallthru
      _
    // Predicated region
    $region22: #{tpu_custom_call.1} parent=1 // pred_check
      _
    $region23: #{tpu_custom_call.1} parent=1 // pred_check_branch
      %58 = sbr.rel (0) target = $region25
    $region24: #{tpu_custom_call.1} parent=1 // pred_region
      %s60 = ssub.s32 512, 512
      %61 = vsyncadd [#allocation9], %s60
      %s62 = sshll.u32 [#allocation8], 4
      %s63 = int_to_ptr.vmem [resolvable:$true] %s62
      %68 = dma.hbm_to_vmem [thread:$0]  %s5, 512, %s63, [#allocation9], 128, 128, 8
    $region25: #{tpu_custom_call.1} parent=1 // pred_fallthru
      _
    // Predicated region
    $region26: #{tpu_custom_call.1} parent=1 // pred_check
      _
    $region27: #{tpu_custom_call.1} parent=1 // pred_check_branch
      %70 = sbr.rel (0) target = $region29
    $region28: #{tpu_custom_call.1} parent=1 // pred_region
      %s72 = ssub.s32 16, 16
      %73 = vsyncadd [#allocation9], %s72
      %s75 = sshll.u32 [#allocation10], 4
      %s76 = int_to_ptr.vmem [resolvable:$true] %s75
      %78 = dma.hbm_to_vmem [thread:$0]  %s6, 16, %s76, [#allocation9]
    $region29: #{tpu_custom_call.1} parent=1 // pred_fallthru
      _
    // Predicated region
    $region30: #{tpu_custom_call.1} parent=1 // pred_check
      _
    $region31: #{tpu_custom_call.1} parent=1 // pred_check_branch
      %80 = sbr.rel (0) target = $region33
    $region32: #{tpu_custom_call.1} parent=1 // pred_region
      %s82 = ssub.s32 16, 16
      %83 = vsyncadd [#allocation12], %s82
      %s85 = sshll.u32 [#allocation11], 4
      %s86 = int_to_ptr.vmem [resolvable:$true] %s85
      %88 = dma.hbm_to_vmem [thread:$0]  %s7, 16, %s86, [#allocation12]
    $region33: #{tpu_custom_call.1} parent=1 // pred_fallthru
      _
    // Predicated region
    $region34: #{tpu_custom_call.1} parent=1 // pred_check
      _
    $region35: #{tpu_custom_call.1} parent=1 // pred_check_branch
      %90 = sbr.rel (0) target = $region37
    $region36: #{tpu_custom_call.1} parent=1 // pred_region
      %s92 = ssub.s32 16, 16
      %93 = vsyncadd [#allocation12], %s92
      %s95 = sshll.u32 [#allocation13], 4
      %s96 = int_to_ptr.vmem [resolvable:$true] %s95
      %98 = dma.hbm_to_vmem [thread:$0]  %s8, 16, %s96, [#allocation12]
    $region37: #{tpu_custom_call.1} parent=1 // pred_fallthru
      _
    // Predicated region
    $region38: #{tpu_custom_call.1} parent=1 // pred_check
      _
    $region39: #{tpu_custom_call.1} parent=1 // pred_check_branch
      %100 = sbr.rel (0) target = $region41
    $region40: #{tpu_custom_call.1} parent=1 // pred_region
      _
    $region41: #{tpu_custom_call.1} parent=1 // pred_fallthru
      _
    // Predicated region
    $region42: #{tpu_custom_call.1} parent=1 // pred_check
      _
    $region43: #{tpu_custom_call.1} parent=1 // pred_check_branch
      %102 = sbr.rel (0) target = $region45
    $region44: #{tpu_custom_call.1} parent=1 // pred_region
      _
    $region45: #{tpu_custom_call.1} parent=1 // pred_fallthru
      _
    // Predicated region
    $region46: #{tpu_custom_call.1} parent=1 // pred_check
      _
    $region47: #{tpu_custom_call.1} parent=1 // pred_check_branch
      %104 = sbr.rel (0) target = $region49
    $region48: #{tpu_custom_call.1} parent=1 // pred_region
      %105 = dma.done [#allocation3], 128
    $region49: #{tpu_custom_call.1} parent=1 // pred_fallthru
      _
    // Predicated region
    $region50: #{tpu_custom_call.1} parent=1 // pred_check
      _
    $region51: #{tpu_custom_call.1} parent=1 // pred_check_branch
      %107 = sbr.rel (0) target = $region53
    $region52: #{tpu_custom_call.1} parent=1 // pred_region
      %108 = dma.done [#allocation6], 256
    $region53: #{tpu_custom_call.1} parent=1 // pred_fallthru
      _
    // Predicated region
    $region54: #{tpu_custom_call.1} parent=1 // pred_check
      _
    $region55: #{tpu_custom_call.1} parent=1 // pred_check_branch
      %110 = sbr.rel (0) target = $region57
    $region56: #{tpu_custom_call.1} parent=1 // pred_region
      %111 = dma.done [#allocation6], 16
    $region57: #{tpu_custom_call.1} parent=1 // pred_fallthru
      _
    // Predicated region
    $region58: #{tpu_custom_call.1} parent=1 // pred_check
      _
    $region59: #{tpu_custom_call.1} parent=1 // pred_check_branch
      %113 = sbr.rel (0) target = $region61
    $region60: #{tpu_custom_call.1} parent=1 // pred_region
      %114 = dma.done [#allocation9], 512
    $region61: #{tpu_custom_call.1} parent=1 // pred_fallthru
      _
    // Predicated region
    $region62: #{tpu_custom_call.1} parent=1 // pred_check
      _
    $region63: #{tpu_custom_call.1} parent=1 // pred_check_branch
      %116 = sbr.rel (0) target = $region65
    $region64: #{tpu_custom_call.1} parent=1 // pred_region
      %117 = dma.done [#allocation9], 16
    $region65: #{tpu_custom_call.1} parent=1 // pred_fallthru
      _
    // Predicated region
    $region66: #{tpu_custom_call.1} parent=1 // pred_check
      _
    $region67: #{tpu_custom_call.1} parent=1 // pred_check_branch
      %119 = sbr.rel (0) target = $region69
    $region68: #{tpu_custom_call.1} parent=1 // pred_region
      %120 = dma.done [#allocation12], 16
    $region69: #{tpu_custom_call.1} parent=1 // pred_fallthru
      _
    // Predicated region
    $region70: #{tpu_custom_call.1} parent=1 // pred_check
      _
    $region71: #{tpu_custom_call.1} parent=1 // pred_check_branch
      %122 = sbr.rel (0) target = $region73
    $region72: #{tpu_custom_call.1} parent=1 // pred_region
      %123 = dma.done [#allocation12], 16
    $region73: #{tpu_custom_call.1} parent=1 // pred_fallthru
      _
    %v124 = vld [vmem:[#allocation2] sm:$0xff]
    %v125 = vld [vmem:[#allocation5] sm:$0xff]
    %v126 = vld [vmem:[#allocation5 + $0x8] sm:$0xff]
    %v127 = vld [vmem:[%s2] sm:$0x1]
    %v129 = vlaneseq
    %v130 = vshrl.u32 %v129, 7
    %v131 = vsub.s32 0, %v130
    %v132 = vrot.slane %v127, %v131
    %vm134 = vcmask 130048
    %v136 = vsel %vm134, %v124, 0
    %138 = vmatprep.subr.mxu0 0.0
    %139 = vmatpush1.msra.mxu0 %v125
    %140 = vmatprep.subr.mxu0 0.0
    %141 = vmatpush1.msra.mxu0 %v126
    %142 = vmatprep.subr.mxu0 0.0
    %143 = vmatpush1.msra.mxu0 0.0
    %144 = vmatprep.subr.mxu0 0.0
    %145 = vmatpush1.msra.mxu0 0.0
    %146 = vmatprep.subr.mxu0 0.0
    %147 = vmatpush1.msra.mxu0 0.0
    %148 = vmatprep.subr.mxu0 0.0
    %149 = vmatpush1.msra.mxu0 0.0
    %150 = vmatprep.subr.mxu0 0.0
    %151 = vmatpush1.msra.mxu0 0.0
    %152 = vmatprep.subr.mxu0 0.0
    %153 = vmatpush1.msra.mxu0 0.0
    %154 = vmatprep.subr.mxu0 0.0
    %155 = vmatpush1.msra.mxu0 0.0
    %156 = vmatprep.subr.mxu0 0.0
    %157 = vmatpush1.msra.mxu0 0.0
    %158 = vmatprep.subr.mxu0 0.0
    %159 = vmatpush1.msra.mxu0 0.0
    %160 = vmatprep.subr.mxu0 0.0
    %161 = vmatpush1.msra.mxu0 0.0
    %162 = vmatprep.subr.mxu0 0.0
    %163 = vmatpush1.msra.mxu0 0.0
    %164 = vmatprep.subr.mxu0 0.0
    %165 = vmatpush1.msra.mxu0 0.0
    %166 = vmatprep.subr.mxu0 0.0
    %167 = vmatpush1.msra.mxu0 0.0
    %168 = vmatprep.subr.mxu0 0.0
    %169 = vmatpush1.msra.mxu0 0.0
    %170 = vmatprep.subr.mxu0 0.0
    %171 = vmatpush1.msra.mxu0 0.0
    %172 = vmatprep.subr.mxu0 0.0
    %173 = vmatpush1.msra.mxu0 0.0
    %174 = vmatprep.subr.mxu0 0.0
    %175 = vmatpush1.msra.mxu0 0.0
    %176 = vmatprep.subr.mxu0 0.0
    %177 = vmatpush1.msra.mxu0 0.0
    %178 = vmatprep.subr.mxu0 0.0
    %179 = vmatpush1.msra.mxu0 0.0
    %180 = vmatprep.subr.mxu0 0.0
    %181 = vmatpush1.msra.mxu0 0.0
    %182 = vmatprep.subr.mxu0 0.0
    %183 = vmatpush1.msra.mxu0 0.0
    %184 = vmatprep.subr.mxu0 0.0
    %185 = vmatpush1.msra.mxu0 0.0
    %186 = vmatprep.subr.mxu0 0.0
    %187 = vmatpush1.msra.mxu0 0.0
    %188 = vmatprep.subr.mxu0 0.0
    %189 = vmatpush1.msra.mxu0 0.0
    %190 = vmatprep.subr.mxu0 0.0
    %191 = vmatpush1.msra.mxu0 0.0
    %192 = vmatprep.subr.mxu0 0.0
    %193 = vmatpush1.msra.mxu0 0.0
    %194 = vmatprep.subr.mxu0 0.0
    %195 = vmatpush1.msra.mxu0 0.0
    %196 = vmatprep.subr.mxu0 0.0
    %197 = vmatpush1.msra.mxu0 0.0
    %198 = vmatprep.subr.mxu0 0.0
    %199 = vmatpush1.msra.mxu0 0.0
    %200 = vmatprep.subr.mxu0 0.0
    %201 = vmatpush1.msra.mxu0 0.0
    %202 = vmatprep.mubr.f32.mxu0 0.0
    %203 = vmatmul.mubr.f32.gmra.mrb[0].mxu0 %v136
    %v204 = vpop.f32.mrb[0].mxu0
    %v205 = vadd.f32 %v132, %v204
    %v206 = vpop.f32.mrb[0].mxu0
    %207 = vdwg.mxu0
    %v208 = vld [vmem:[%s3] sm:$0x1]
    %v209 = vld [vmem:[#allocation7] sm:$0x1]
    %vm210 = vcmask 261120
    %v211 = vsel %vm210, %v205, 0.0
    %212 = vadd.xlane.f32.xlu0 %v211
    %v213 = vpop.xlane.xlu0 %212
    %v214 = vmul.f32 %v213, 0.03125
    %v215 = vsub.f32 %v205, %v214
    %v216 = vmul.f32 %v215, %v215
    %v217 = vsel %vm210, %v216, 0.0
    %218 = vadd.xlane.f32.xlu0 %v217
    %v219 = vpop.xlane.xlu0 %218
    %v220 = vmul.f32 %v219, 0.03125
    %v221 = vadd.f32 %v220, 1e-05
    %v222 = vrsqrt.pop %v221
    %v224 = vlaneseq
    %v225 = vshrl.u32 %v224, 7
    %v226 = vsub.s32 0, %v225
    %v227 = vrot.slane %v208, %v226
    %v229 = vmul.f32 %v222, %v227
    %v230 = vmul.f32 %v215, %v229
    %v232 = vlaneseq
    %v233 = vshrl.u32 %v232, 7
    %v234 = vsub.s32 0, %v233
    %v235 = vrot.slane %v209, %v234
    %v237 = vadd.f32 %v230, %v235
    %v238 = vmax.f32 %v237, 0.0
    %v239 = vld [vmem:[#allocation8] sm:$0xff]
    %v240 = vld [vmem:[#allocation8 + $0x8] sm:$0xff]
    %v241 = vld [vmem:[#allocation8 + $0x10] sm:$0xff]
    %v242 = vld [vmem:[#allocation8 + $0x18] sm:$0xff]
    %v243 = vld [vmem:[#allocation10] sm:$0x1]
    %v245 = vlaneseq
    %v246 = vshrl.u32 %v245, 7
    %v247 = vsub.s32 0, %v246
    %v248 = vrot.slane %v243, %v247
    %v251 = vsel %vm210, %v238, 0
    %253 = vmatprep.subr.mxu0 0.0
    %254 = vmatpush1.msra.mxu0 %v239
    %255 = vmatprep.subr.mxu0 0.0
    %256 = vmatpush1.msra.mxu0 %v240
    %257 = vmatprep.subr.mxu0 0.0
    %258 = vmatpush1.msra.mxu0 %v241
    %259 = vmatprep.subr.mxu0 0.0
    %260 = vmatpush1.msra.mxu0 %v242
    %261 = vmatprep.subr.mxu0 0.0
    %262 = vmatpush1.msra.mxu0 0.0
    %263 = vmatprep.subr.mxu0 0.0
    %264 = vmatpush1.msra.mxu0 0.0
    %265 = vmatprep.subr.mxu0 0.0
    %266 = vmatpush1.msra.mxu0 0.0
    %267 = vmatprep.subr.mxu0 0.0
    %268 = vmatpush1.msra.mxu0 0.0
    %269 = vmatprep.subr.mxu0 0.0
    %270 = vmatpush1.msra.mxu0 0.0
    %271 = vmatprep.subr.mxu0 0.0
    %272 = vmatpush1.msra.mxu0 0.0
    %273 = vmatprep.subr.mxu0 0.0
    %274 = vmatpush1.msra.mxu0 0.0
    %275 = vmatprep.subr.mxu0 0.0
    %276 = vmatpush1.msra.mxu0 0.0
    %277 = vmatprep.subr.mxu0 0.0
    %278 = vmatpush1.msra.mxu0 0.0
    %279 = vmatprep.subr.mxu0 0.0
    %280 = vmatpush1.msra.mxu0 0.0
    %281 = vmatprep.subr.mxu0 0.0
    %282 = vmatpush1.msra.mxu0 0.0
    %283 = vmatprep.subr.mxu0 0.0
    %284 = vmatpush1.msra.mxu0 0.0
    %285 = vmatprep.subr.mxu0 0.0
    %286 = vmatpush1.msra.mxu0 0.0
    %287 = vmatprep.subr.mxu0 0.0
    %288 = vmatpush1.msra.mxu0 0.0
    %289 = vmatprep.subr.mxu0 0.0
    %290 = vmatpush1.msra.mxu0 0.0
    %291 = vmatprep.subr.mxu0 0.0
    %292 = vmatpush1.msra.mxu0 0.0
    %293 = vmatprep.subr.mxu0 0.0
    %294 = vmatpush1.msra.mxu0 0.0
    %295 = vmatprep.subr.mxu0 0.0
    %296 = vmatpush1.msra.mxu0 0.0
    %297 = vmatprep.subr.mxu0 0.0
    %298 = vmatpush1.msra.mxu0 0.0
    %299 = vmatprep.subr.mxu0 0.0
    %300 = vmatpush1.msra.mxu0 0.0
    %301 = vmatprep.subr.mxu0 0.0
    %302 = vmatpush1.msra.mxu0 0.0
    %303 = vmatprep.subr.mxu0 0.0
    %304 = vmatpush1.msra.mxu0 0.0
    %305 = vmatprep.subr.mxu0 0.0
    %306 = vmatpush1.msra.mxu0 0.0
    %307 = vmatprep.subr.mxu0 0.0
    %308 = vmatpush1.msra.mxu0 0.0
    %309 = vmatprep.subr.mxu0 0.0
    %310 = vmatpush1.msra.mxu0 0.0
    %311 = vmatprep.subr.mxu0 0.0
    %312 = vmatpush1.msra.mxu0 0.0
    %313 = vmatprep.subr.mxu0 0.0
    %314 = vmatpush1.msra.mxu0 0.0
    %315 = vmatprep.subr.mxu0 0.0
    %316 = vmatpush1.msra.mxu0 0.0
    %317 = vmatprep.mubr.f32.mxu0 0.0
    %318 = vmatmul.mubr.f32.gmra.mrb[0].mxu0 %v251
    %v319 = vpop.f32.mrb[0].mxu0
    %v320 = vadd.f32 %v248, %v319
    %v321 = vpop.f32.mrb[0].mxu0
    %322 = vdwg.mxu0
    %v323 = vld [vmem:[#allocation11] sm:$0x1]
    %v324 = vld [vmem:[#allocation13] sm:$0x1]
    %v325 = vsel %vm210, %v320, 0.0
    %326 = vadd.xlane.f32.xlu0 %v325
    %v327 = vpop.xlane.xlu0 %326
    %v328 = vmul.f32 %v327, 0.03125
    %v329 = vsub.f32 %v320, %v328
    %v330 = vmul.f32 %v329, %v329
    %v331 = vsel %vm210, %v330, 0.0
    %332 = vadd.xlane.f32.xlu0 %v331
    %v333 = vpop.xlane.xlu0 %332
    %v334 = vmul.f32 %v333, 0.03125
    %v335 = vadd.f32 %v334, 1e-05
    %v336 = vrsqrt.pop %v335
    %v338 = vlaneseq
    %v339 = vshrl.u32 %v338, 7
    %v340 = vsub.s32 0, %v339
    %v341 = vrot.slane %v323, %v340
    %v343 = vmul.f32 %v336, %v341
    %v344 = vmul.f32 %v329, %v343
    %v346 = vlaneseq
    %v347 = vshrl.u32 %v346, 7
    %v348 = vsub.s32 0, %v347
    %v349 = vrot.slane %v324, %v348
    %v351 = vadd.f32 %v344, %v349
    %v352 = vmax.f32 %v351, 0.0
    %v353 = vld [vmem:[%s9] sm:$0xff]
    %v354 = vld [vmem:[%s9 + $0x8] sm:$0xff]
    %v355 = vld [vmem:[%s9 + $0x10] sm:$0xff]
    %v356 = vld [vmem:[%s9 + $0x18] sm:$0xff]
    %v357 = vld [vmem:[%s10] sm:$0x1]
    %v359 = vlaneseq
    %v360 = vshrl.u32 %v359, 7
    %v361 = vsub.s32 0, %v360
    %v362 = vrot.slane %v357, %v361
    %v365 = vsel %vm210, %v352, 0
    %367 = vmatprep.subr.mxu0 0.0
    %368 = vmatpush1.msra.mxu0 %v353
    %369 = vmatprep.subr.mxu0 0.0
    %370 = vmatpush1.msra.mxu0 %v354
    %371 = vmatprep.subr.mxu0 0.0
    %372 = vmatpush1.msra.mxu0 %v355
    %373 = vmatprep.subr.mxu0 0.0
    %374 = vmatpush1.msra.mxu0 %v356
    %375 = vmatprep.subr.mxu0 0.0
    %376 = vmatpush1.msra.mxu0 0.0
    %377 = vmatprep.subr.mxu0 0.0
    %378 = vmatpush1.msra.mxu0 0.0
    %379 = vmatprep.subr.mxu0 0.0
    %380 = vmatpush1.msra.mxu0 0.0
    %381 = vmatprep.subr.mxu0 0.0
    %382 = vmatpush1.msra.mxu0 0.0
    %383 = vmatprep.subr.mxu0 0.0
    %384 = vmatpush1.msra.mxu0 0.0
    %385 = vmatprep.subr.mxu0 0.0
    %386 = vmatpush1.msra.mxu0 0.0
    %387 = vmatprep.subr.mxu0 0.0
    %388 = vmatpush1.msra.mxu0 0.0
    %389 = vmatprep.subr.mxu0 0.0
    %390 = vmatpush1.msra.mxu0 0.0
    %391 = vmatprep.subr.mxu0 0.0
    %392 = vmatpush1.msra.mxu0 0.0
    %393 = vmatprep.subr.mxu0 0.0
    %394 = vmatpush1.msra.mxu0 0.0
    %395 = vmatprep.subr.mxu0 0.0
    %396 = vmatpush1.msra.mxu0 0.0
    %397 = vmatprep.subr.mxu0 0.0
    %398 = vmatpush1.msra.mxu0 0.0
    %399 = vmatprep.subr.mxu0 0.0
    %400 = vmatpush1.msra.mxu0 0.0
    %401 = vmatprep.subr.mxu0 0.0
    %402 = vmatpush1.msra.mxu0 0.0
    %403 = vmatprep.subr.mxu0 0.0
    %404 = vmatpush1.msra.mxu0 0.0
    %405 = vmatprep.subr.mxu0 0.0
    %406 = vmatpush1.msra.mxu0 0.0
    %407 = vmatprep.subr.mxu0 0.0
    %408 = vmatpush1.msra.mxu0 0.0
    %409 = vmatprep.subr.mxu0 0.0
    %410 = vmatpush1.msra.mxu0 0.0
    %411 = vmatprep.subr.mxu0 0.0
    %412 = vmatpush1.msra.mxu0 0.0
    %413 = vmatprep.subr.mxu0 0.0
    %414 = vmatpush1.msra.mxu0 0.0
    %415 = vmatprep.subr.mxu0 0.0
    %416 = vmatpush1.msra.mxu0 0.0
    %417 = vmatprep.subr.mxu0 0.0
    %418 = vmatpush1.msra.mxu0 0.0
    %419 = vmatprep.subr.mxu0 0.0
    %420 = vmatpush1.msra.mxu0 0.0
    %421 = vmatprep.subr.mxu0 0.0
    %422 = vmatpush1.msra.mxu0 0.0
    %423 = vmatprep.subr.mxu0 0.0
    %424 = vmatpush1.msra.mxu0 0.0
    %425 = vmatprep.subr.mxu0 0.0
    %426 = vmatpush1.msra.mxu0 0.0
    %427 = vmatprep.subr.mxu0 0.0
    %428 = vmatpush1.msra.mxu0 0.0
    %429 = vmatprep.subr.mxu0 0.0
    %430 = vmatpush1.msra.mxu0 0.0
    %431 = vmatprep.mubr.f32.mxu0 0.0
    %432 = vmatmul.mubr.f32.gmra.mrb[0].mxu0 %v365
    %v433 = vpop.f32.mrb[0].mxu0
    %v434 = vadd.f32 %v362, %v433
    %v435 = vpop.f32.mrb[0].mxu0
    %436 = vdwg.mxu0
    %v437 = vtanh.pop %v434
    %438 = vst [vmem:[#allocation14] sm:$0xff] %v437
    // Predicated region
    $region74: #{tpu_custom_call.1} parent=1 // pred_check
      _
    $region75: #{tpu_custom_call.1} parent=1 // pred_check_branch
      %440 = sbr.rel (0) target = $region77
    $region76: #{tpu_custom_call.1} parent=1 // pred_region
      %s442 = ssub.s32 128, 128
      %443 = vsyncadd [#allocation4], %s442
      %s445 = sshll.u32 [#allocation14], 4
      %s446 = int_to_ptr.vmem [resolvable:$true] %s445
      %448 = dma.vmem_to_hbm [thread:$0]  %s446, 128, %s11, [#allocation4]
    $region77: #{tpu_custom_call.1} parent=1 // pred_fallthru
      _
    // Predicated region
    $region78: #{tpu_custom_call.1} parent=1 // pred_check
      _
    $region79: #{tpu_custom_call.1} parent=1 // pred_check_branch
      %450 = sbr.rel (0) target = $region81
    $region80: #{tpu_custom_call.1} parent=1 // pred_region
      %451 = dma.done [#allocation4], 128
    $region81: #{tpu_custom_call.1} parent=1 // pred_fallthru
      _
    %452 = vsyncpa [#allocation3], 1
    %453 = vsyncpa [#allocation6], 1
    %454 = vsyncpa [#allocation9], 1
    %455 = vsyncpa [#allocation12], 1
    %456 = vsyncpa [#allocation4], 1

</llo_original>
